<compile_context>
chip_gen: v5e
topology: v5e:2x2
jax: 0.10.0
libtpu: 0.0.40
codegen_flags: <defaults>
</compile_context>

<pallas_src>
import functools

import jax
import jax.numpy as jnp
from jax.experimental import pallas as pl
from jax.experimental.pallas import tpu as pltpu


def _round_up(x: int, m: int) -> int:
    return ((x + m - 1) // m) * m


def _shuffle_kernel(x_ref, o_ref, *, groups, cpg):
    # x_ref/o_ref: (1, C, L) VMEM tiles over the flattened (N, C, H*W) layout.
    # Channel shuffle: out[i*g + j] = in[j*cpg + i], i in [0,cpg), j in [0,groups).
    # Single in-VMEM sublane relayout pass (XLU); lanes untouched.
    x = x_ref[0]                      # (C, L)
    c, l = x.shape
    o_ref[0] = x.reshape(groups, cpg, l).transpose(1, 0, 2).reshape(c, l)


def _pick_lane_block(hw: int, c: int, itemsize: int, n: int,
                     max_block_bytes: int = 6 << 20) -> int:
    """Lane-block length L.

    - multiple of 128 (or the full extent when H*W <= 128),
    - capped by the per-buffer byte budget (budget-binding, not lane-count),
    - never larger than H*W rounded up to 128 (no divisor requirement; the
      ragged tail block is masked by Pallas),
    - when N == 1, split so the parallel grid has >= 2 steps (v7x megacore).
    """
    if hw <= 128:
        # Full extent — allowed by the (8,128) rule, nothing worth tiling.
        return hw
    lane_budget = max(128, (max_block_bytes // (c * itemsize)) // 128 * 128)
    L = min(lane_budget, _round_up(hw, 128))
    if n == 1 and pl.cdiv(hw, L) < 2:
        L = max(128, _round_up((hw + 1) // 2, 128))
    return L


def _shuffle_flat(x_flat: jax.Array, groups: int) -> jax.Array:
    """Channel shuffle of a flattened (N, C, HW) array."""
    N, C, HW = x_flat.shape
    cpg = C // groups
    itemsize = jnp.dtype(x_flat.dtype).itemsize

    L = _pick_lane_block(HW, C, itemsize, N)
    num_lane_blocks = pl.cdiv(HW, L)

    block_bytes = C * L * itemsize
    # in + out buffers, each double-buffered, plus headroom.  Floor at the
    # 32 MiB default; ceiling at 48 MiB so v7x (64 MiB physical) is safe.
    vmem_limit = min(max(32 << 20, 4 * block_bytes + (4 << 20)), 48 << 20)

    kernel = functools.partial(_shuffle_kernel, groups=groups, cpg=cpg)

    return pl.pallas_call(
        kernel,
        out_shape=jax.ShapeDtypeStruct((N, C, HW), x_flat.dtype),
        grid_spec=pltpu.PrefetchScalarGridSpec(
            num_scalar_prefetch=0,
            grid=(N, num_lane_blocks),
            in_specs=[pl.BlockSpec((1, C, L), lambda n, l: (n, 0, l))],
            out_specs=pl.BlockSpec((1, C, L), lambda n, l: (n, 0, l)),
        ),
        compiler_params=pltpu.CompilerParams(
            dimension_semantics=("parallel", "parallel"),
            vmem_limit_bytes=vmem_limit,
        ),
        cost_estimate=pl.CostEstimate(
            flops=0,
            transcendentals=0,
            bytes_accessed=2 * N * C * HW * itemsize,
        ),
    )(x_flat)


def shuffle_block(x: jax.Array, groups: int) -> jax.Array:
    """Channel shuffle of an NCHW tensor, equivalent to:
    x.view(N, g, C//g, H, W).permute(0, 2, 1, 3, 4).reshape(N, C, H, W)
    """
    N, C, H, W = x.shape
    g = groups
    assert C % g == 0, "C must be divisible by groups"

    HW = H * W
    itemsize = jnp.dtype(x.dtype).itemsize
    x_flat = x.reshape(N, C, HW)

    # Sub-32-bit dtypes: pack adjacent lanes into 32-bit containers so the
    # channel (sublane) permute runs at 32-bit row granularity in the kernel.
    # These are pure layout bitcasts in the wrapper (no extra HBM pass).
    pack = 1
    if itemsize < 4 and (HW * itemsize) % 4 == 0:
        pack = 4 // itemsize
        x_run = jax.lax.bitcast_convert_type(
            x_flat.reshape(N, C, HW // pack, pack), jnp.uint32)
    else:
        x_run = x_flat

    out_run = _shuffle_flat(x_run, g)

    if pack > 1:
        out_flat = jax.lax.bitcast_convert_type(out_run, x.dtype).reshape(N, C, HW)
    else:
        out_flat = out_run

    return out_flat.reshape(N, C, H, W)


def shuffle_block_ref(x: jax.Array, groups: int) -> jax.Array:
    """Pure-JAX reference (mirrors the PyTorch view/permute/view)."""
    N, C, H, W = x.shape
    g = groups
    return (
        x.reshape(N, g, C // g, H, W)
        .transpose(0, 2, 1, 3, 4)
        .reshape(N, C, H, W)
    )


if __name__ == "__main__":
    key = jax.random.PRNGKey(0)
    N, C, H, W = 2, 4, 16, 16
    groups = 2

    # float32 path
    x = jax.random.normal(key, (N, C, H, W), dtype=jnp.float32)
    out = shuffle_block(x, groups)
    out = jax.block_until_ready(out)
    ref = shuffle_block_ref(x, groups)
    assert out.shape == (N, C, H, W)
    assert out.dtype == x.dtype
    assert jnp.array_equal(out, ref), "Pallas channel shuffle mismatch (f32)"

    # bfloat16 path (exercises the 32-bit lane-packing wrapper)
    x_bf16 = x.astype(jnp.bfloat16)
    out_bf16 = jax.block_until_ready(shuffle_block(x_bf16, groups))
    ref_bf16 = shuffle_block_ref(x_bf16, groups)
    assert out_bf16.dtype == jnp.bfloat16
    assert jnp.array_equal(out_bf16, ref_bf16), "Pallas channel shuffle mismatch (bf16)"

    print("KERNEL_OK")
</pallas_src>

<mosaic_0001>
module attributes {stable_mosaic.version = 11 : i64} {
  func.func @_shuffle_kernel(%arg0: i32, %arg1: i32, %arg2: memref<1x4x256xf32, #tpu.memory_space<vmem>>, %arg3: memref<1x4x256xf32, #tpu.memory_space<vmem>>) attributes {dimension_semantics = [#tpu.dimension_semantics<parallel>, #tpu.dimension_semantics<parallel>], iteration_bounds = array<i64: 2, 1>, scalar_prefetch = 0 : i64, scratch_operands = 0 : i64, tpu.core_type = #tpu.core_type<tc>, window_params = [{transform_indices = @transform_0, window_bounds = array<i64: 1, 4, 256>}, {transform_indices = @transform_1, window_bounds = array<i64: 1, 4, 256>}]} {
    %c0 = arith.constant 0 : index
    %c0_0 = arith.constant 0 : index
    %c0_1 = arith.constant 0 : index
    %0 = vector.load %arg2[%c0, %c0_0, %c0_1] : memref<1x4x256xf32, #tpu.memory_space<vmem>>, vector<1x4x256xf32>
    %1 = vector.shape_cast %0 : vector<1x4x256xf32> to vector<4x256xf32>
    %2 = vector.shape_cast %1 : vector<4x256xf32> to vector<2x2x256xf32>
    %3 = tpu.transpose %2, [1, 0, 2] : vector<2x2x256xf32> -> vector<2x2x256xf32>
    %4 = vector.shape_cast %3 : vector<2x2x256xf32> to vector<4x256xf32>
    %c0_2 = arith.constant 0 : index
    %c0_3 = arith.constant 0 : index
    %c0_4 = arith.constant 0 : index
    %5 = vector.load %arg3[%c0_2, %c0_3, %c0_4] : memref<1x4x256xf32, #tpu.memory_space<vmem>>, vector<1x4x256xf32>
    %6 = vector.shape_cast %5 : vector<1x4x256xf32> to vector<4x256xf32>
    %7 = vector.shape_cast %4 : vector<4x256xf32> to vector<1x4x256xf32>
    tpu.vector_store %arg3[%c0_2, %c0_3, %c0_4], %7 {strides = array<i32>} : memref<1x4x256xf32, #tpu.memory_space<vmem>>, vector<1x4x256xf32>,
    return
  }
  func.func @transform_0(%arg0: i32, %arg1: i32) -> (i32, i32, i32) {
    %c0_i32 = arith.constant 0 : i32
    %c0_i32_0 = arith.constant 0 : i32
    return %arg0, %c0_i32, %arg1 : i32, i32, i32
  }
  func.func @transform_1(%arg0: i32, %arg1: i32) -> (i32, i32, i32) {
    %c0_i32 = arith.constant 0 : i32
    %c0_i32_0 = arith.constant 0 : i32
    return %arg0, %c0_i32, %arg1 : i32, i32, i32
  }
}

</mosaic_0001>

<llo_original>
// kernel: tpu_custom_call.1
$region0: #{tpu_custom_call.1}
  #allocation0 [shape = 'u32[]', space=smem, size = 0x4, offset = 0x4, fixed_abs, tag = 'smem constant byte address 0x4 - core index']
  #allocation1 [shape = 'u32[72,128]{1,0:T(1,128)}', space=vmem, size = 0x9000, scoped, tag = 'internal scratch']
  %s0 = inlined_call_operand.hbm [shape: f32[2,4,256], index: 0, kind: input, shape index: {}]
  %s1 = inlined_call_operand.hbm [shape: f32[2,4,256], index: 1, kind: output, shape index: {}]
  %s2 = sld [smem:[#allocation0]]
  $region41: #{tpu_custom_call.1} parent=0
    _
  %s4 = ssub.s32 1, %s2
  %s5 = scalar_select 0, %s4, %s2
  $region1: #{tpu_custom_call.1} parent=0
    #allocation2 [shape = 'u8[8192]{0}', space=vmem, size = 0x2000, scoped, tag = 'input window, operand 0']
    #allocation3 [shape = 's32[2]{0}', space=sflag, size = 0x8, scoped, tag = 'scoped memory for tpu_custom_call.1']
    #allocation4 [shape = 's32[2]{0}', space=sflag, size = 0x8, scoped, tag = 'scoped memory for tpu_custom_call.1']
    #allocation5 [shape = 'u8[8192]{0}', space=vmem, size = 0x2000, scoped, tag = 'output window, operand 0']
    %6 = vsyncpa [#allocation3], 0
    %s7 = scalar_lea.sflag [#allocation3], 1
    %8 = vsyncpa %s7, 0
    %9 = vsyncpa [#allocation4], 0
    %s10 = scalar_lea.sflag [#allocation4], 1
    %11 = vsyncpa %s10, 0
    loop: start=0, step=1, limit=4
    $region2: #{tpu_custom_call.1} parent=1 // loop_pre_header
      _
    $region3: #{tpu_custom_call.1} parent=1 // loop_header
      %s13 = sphi 0, %s17
      %p14 = scmp.ge.s32.totalorder %s13, 4
      %s20 = sphi 0, %s32
      %s21 = sphi 0, %s28
      %s22 = sphi 0, %s20
      %s23 = sphi 0, %s21
      %s24 = sphi 0, %s22
      %s25 = sphi 0, %s23
      %s37 = sphi 0, %s39
      %s40 = sphi 0, %s37
      %s41 = sphi 0, %s40
      %s57 = sphi 0, %s41
      %s65 = sphi 0, %s67
      %s68 = sphi 0, %s65
      %s69 = sphi 0, %s68
      %s85 = sphi 0, %s69
    $region4: #{tpu_custom_call.1} parent=1 // loop_header_branch
      %16 = sbr.rel (%p14) target = $region8
    $region5: #{tpu_custom_call.1} parent=1 // loop_body
      %s18 = ssub.s32 %s13, 1
      %s19 = ssub.s32 %s13, 2
      %s26 = sadd.s32 1, %s21
      %p27 = scmp.ge.s32.totalorder %s26, 1
      %s28 = scalar_select %p27, 0, %s26
      %s29 = sadd.s32 1, %s20
      %s30 = scalar_select %p27, %s29, %s20
      %p31 = scmp.ge.s32.totalorder %s30, 2
      %s32 = scalar_select %p31, 0, %s30
      %s33 = ssub.s32 %s20, %s32
      %s34 = ssub.s32 %s21, %s28
      %s35 = sor.u32 %s33, %s34
      %p36 = scmp.eq.s32.totalorder %s35, 0
      %s38 = sadd.s32 %s37, 1
      %s39 = scalar_select %p36, %s37, %s38
      %p42 = pneg %p36
      %p43 = scmp.eq.s32.totalorder %s13, 1
      %p44 = por %p42, %p43
      %p45 = scmp.ne.s32.totalorder %s37, %s40
      %p46 = scmp.eq.s32.totalorder %s13, 0
      %p47 = por %p45, %p46
      %p48 = scmp.ne.s32.totalorder %s37, %s40
      %p49 = scmp.eq.s32.totalorder %s18, 1
      %p50 = por %p48, %p49
      %p51 = scmp.ne.s32.totalorder %s40, %s41
      %p52 = scmp.eq.s32.totalorder %s18, 0
      %p53 = por %p51, %p52
      %p54 = scmp.ne.s32.totalorder %s40, %s41
      %p55 = scmp.eq.s32.totalorder %s19, 1
      %p56 = por %p54, %p55
      %p58 = scmp.ne.s32.totalorder %s41, %s57
      %p59 = scmp.eq.s32.totalorder %s19, 0
      %p60 = por %p58, %p59
      %s61 = ssub.s32 %s20, %s32
      %s62 = ssub.s32 %s21, %s28
      %s63 = sor.u32 %s61, %s62
      %p64 = scmp.eq.s32.totalorder %s63, 0
      %s66 = sadd.s32 %s65, 1
      %s67 = scalar_select %p64, %s65, %s66
      %p70 = pneg %p64
      %p71 = scmp.eq.s32.totalorder %s13, 1
      %p72 = por %p70, %p71
      %p73 = scmp.ne.s32.totalorder %s65, %s68
      %p74 = scmp.eq.s32.totalorder %s13, 0
      %p75 = por %p73, %p74
      %p76 = scmp.ne.s32.totalorder %s65, %s68
      %p77 = scmp.eq.s32.totalorder %s18, 1
      %p78 = por %p76, %p77
      %p79 = scmp.ne.s32.totalorder %s68, %s69
      %p80 = scmp.eq.s32.totalorder %s18, 0
      %p81 = por %p79, %p80
      %p82 = scmp.ne.s32.totalorder %s68, %s69
      %p83 = scmp.eq.s32.totalorder %s19, 1
      %p84 = por %p82, %p83
      %p86 = scmp.ne.s32.totalorder %s69, %s85
      %p87 = scmp.eq.s32.totalorder %s19, 0
      %p88 = por %p86, %p87
      %p89 = scmp.le.s32.totalorder 1, %s13
      %p90 = scmp.lt.s32.totalorder %s13, 3
      %p91 = pnand %p89, %p90
      %p92 = pneg %p91
      // Predicated region
      $region9: #{tpu_custom_call.1} parent=5 // pred_check
        _
      $region10: #{tpu_custom_call.1} parent=5 // pred_check_branch
        %94 = sbr.rel (%p91) target = $region12
      $region11: #{tpu_custom_call.1} parent=5 // pred_region
        %s95 = ssub.s32 %s13, 1
      $region12: #{tpu_custom_call.1} parent=5 // pred_fallthru
        _
      %p96 = scmp.lt.s32.totalorder %s13, 2
      // Predicated region
      $region13: #{tpu_custom_call.1} parent=5 // pred_check
        %p97 = pneg %p96
      $region14: #{tpu_custom_call.1} parent=5 // pred_check_branch
        %99 = sbr.rel (%p97) target = $region16
      $region15: #{tpu_custom_call.1} parent=5 // pred_region
        // Predicated region
        $region17: #{tpu_custom_call.1} parent=15 // pred_check
          %p100 = pneg %p47
        $region18: #{tpu_custom_call.1} parent=15 // pred_check_branch
          %102 = sbr.rel (%p100) target = $region20
        $region19: #{tpu_custom_call.1} parent=15 // pred_region
          %s103 = sand.u32 %s37, 1
          %s104 = scalar_lea.sflag [#allocation3], %s103
          %s105 = sand.u32 %s37, 1
          %s106 = smul.addr %s105, 8
          %s107 = scalar_lea.vmem [#allocation2], %s106
          %s108 = smul.u32 2, %s21
          %110 = vsyncadd %s104, 0
          %s111 = smul.addr %s20, 2
          %s112 = sadd.s32 %s108, %s111
          %s113 = smul.addr %s112, 4
          %s114 = scalar_lea.hbm %s0, %s113
          %s116 = sshll.u32 %s114, 4
          %s117 = int_to_ptr.hbm [resolvable:$true] %s116
          %s118 = sshll.u32 %s107, 4
          %s119 = int_to_ptr.vmem [resolvable:$true] %s118
          %121 = dma.hbm_to_vmem [thread:$0]  %s117, 128, %s119, %s104
        $region20: #{tpu_custom_call.1} parent=15 // pred_fallthru
          _
      $region16: #{tpu_custom_call.1} parent=5 // pred_fallthru
        _
      %p122 = scmp.le.s32.totalorder 1, %s13
      %p123 = scmp.lt.s32.totalorder %s13, 3
      %p124 = pnand %p122, %p123
      %p125 = pneg %p124
      // Predicated region
      $region21: #{tpu_custom_call.1} parent=5 // pred_check
        _
      $region22: #{tpu_custom_call.1} parent=5 // pred_check_branch
        %127 = sbr.rel (%p124) target = $region24
      $region23: #{tpu_custom_call.1} parent=5 // pred_region
        %s128 = ssub.s32 %s13, 1
        %s129 = sand.u32 %s40, 1
        %s130 = scalar_lea.sflag [#allocation3], %s129
        %s131 = sand.u32 %s40, 1
        %s132 = smul.addr %s131, 8
        %s133 = scalar_lea.vmem [#allocation2], %s132
        // Predicated region
        $region25: #{tpu_custom_call.1} parent=23 // pred_check
          %p134 = pneg %p53
        $region26: #{tpu_custom_call.1} parent=23 // pred_check_branch
          %136 = sbr.rel (%p134) target = $region28
        $region27: #{tpu_custom_call.1} parent=23 // pred_region
          %138 = dma.done %s130, 128
        $region28: #{tpu_custom_call.1} parent=23 // pred_fallthru
          _
        %s139 = sand.u32 %s40, 1
        %s140 = scalar_lea.sflag [#allocation3], %s139
        %s141 = sand.u32 %s40, 1
        %s142 = smul.addr %s141, 8
        %s143 = scalar_lea.vmem [#allocation2], %s142
        %p144 = pneg %p53
        %p145 = pneg %p50
        %p146 = pneg %p81
        %p147 = pneg %p78
        %s148 = sand.u32 %s68, 1
        %s149 = scalar_lea.sflag [#allocation4], %s148
        %s150 = sand.u32 %s68, 1
        %s151 = smul.addr %s150, 8
        %s152 = scalar_lea.vmem [#allocation5], %s151
        %s153 = smul.u32 2, %s23
        %s154 = smul.u32 2, %s23
        %v155 = vld [vmem:[%s133] sm:$0xff]
        %v157 = vrot.slane %v155, 2
        %vm158 = vcmask 1041408
        %v159 = vsel %vm158, %v155, %v157
        %vm160 = vcmask 1043458
        %v161 = vsel %vm160, %v155, %v157
        %v162 = vrot.slane %v161, 2
        %v165 = vrot.slane %v162, 4
        %vm166 = vcmask 1047556
        %v167 = vsel %vm166, %v165, %v159
        %v169 = vunpack.c.l.s4 1934713408
        %v170 = vunpack.c.0.s8 %v169
        %v171 = vperm.slane %v167, %v170
        %v172 = vrot.slane %v171, 4
        %v173 = vsel %vm166, 0.0, %v172
        %176 = vst [vmem:[#allocation1] ss:$2 sm:$0xff] %v171
        %s177 = scalar_lea.vmem [#allocation1], 1
        %178 = vst [vmem:[%s177] ss:$2 sm:$0xff] %v173
        %v179 = vld.sshfl [vmem:[#allocation1] sm:$0xff pattern:$0x75643120]
        %181 = vst [vmem:[%s152] sm:$0xff] %v179
        %s182 = sand.u32 %s68, 1
        %s183 = scalar_lea.sflag [#allocation4], %s182
        %s184 = sand.u32 %s68, 1
        %s185 = smul.addr %s184, 8
        %s186 = scalar_lea.vmem [#allocation5], %s185
        // Predicated region
        $region29: #{tpu_custom_call.1} parent=23 // pred_check
          %p187 = pneg %p78
        $region30: #{tpu_custom_call.1} parent=23 // pred_check_branch
          %189 = sbr.rel (%p187) target = $region32
        $region31: #{tpu_custom_call.1} parent=23 // pred_region
          %s190 = smul.u32 2, %s23
          %192 = vsyncadd %s183, 0
          %s193 = smul.addr %s22, 2
          %s194 = sadd.s32 %s190, %s193
          %s195 = smul.addr %s194, 4
          %s196 = scalar_lea.hbm %s1, %s195
          %s198 = sshll.u32 %s186, 4
          %s199 = int_to_ptr.vmem [resolvable:$true] %s198
          %s200 = sshll.u32 %s196, 4
          %s201 = int_to_ptr.hbm [resolvable:$true] %s200
          %203 = dma.vmem_to_hbm [thread:$0]  %s199, 128, %s201, %s183
        $region32: #{tpu_custom_call.1} parent=23 // pred_fallthru
          _
      $region24: #{tpu_custom_call.1} parent=5 // pred_fallthru
        _
      %p204 = scmp.le.s32.totalorder 2, %s13
      // Predicated region
      $region33: #{tpu_custom_call.1} parent=5 // pred_check
        %p205 = pneg %p204
      $region34: #{tpu_custom_call.1} parent=5 // pred_check_branch
        %207 = sbr.rel (%p205) target = $region36
      $region35: #{tpu_custom_call.1} parent=5 // pred_region
        %s208 = ssub.s32 %s13, 2
        // Predicated region
        $region37: #{tpu_custom_call.1} parent=35 // pred_check
          %p209 = pneg %p84
        $region38: #{tpu_custom_call.1} parent=35 // pred_check_branch
          %211 = sbr.rel (%p209) target = $region40
        $region39: #{tpu_custom_call.1} parent=35 // pred_region
          %s212 = sand.u32 %s69, 1
          %s213 = scalar_lea.sflag [#allocation4], %s212
          %s214 = sand.u32 %s69, 1
          %s215 = smul.addr %s214, 8
          %s216 = scalar_lea.vmem [#allocation5], %s215
          %218 = dma.done %s213, 128
        $region40: #{tpu_custom_call.1} parent=35 // pred_fallthru
          _
      $region36: #{tpu_custom_call.1} parent=5 // pred_fallthru
        _
    $region6: #{tpu_custom_call.1} parent=1 // loop_footer
      %s17 = sadd.s32 1, %s13
    $region7: #{tpu_custom_call.1} parent=1 // loop_footer_branch
      %12 = sbr.rel target = $region3
    $region8: #{tpu_custom_call.1} parent=1 // loop_exit
      _
    %219 = vsyncpa [#allocation3], 1
    %s220 = scalar_lea.sflag [#allocation3], 1
    %221 = vsyncpa %s220, 1
    %222 = vsyncpa [#allocation4], 1
    %s223 = scalar_lea.sflag [#allocation4], 1
    %224 = vsyncpa %s223, 1

</llo_original>
